<compile_context>
chip_gen: v7x
topology: tpu7x:2x2x1
jax: 0.10.0
libtpu: 0.0.40
codegen_flags: <defaults>
</compile_context>

<pallas_src>
import functools

import numpy as np
import jax
import jax.numpy as jnp
from jax.experimental import pallas as pl
from jax.experimental.pallas import tpu as pltpu


# ----------------------------------------------------------------------------
# Fused Pallas kernel: gat1 (+ELU) -> gat2 -> edge_mlp
# ----------------------------------------------------------------------------
def _gat_encoder_fused_kernel(*refs, dims, x_is_identity, negative_slope):
    """Whole GATEncoderWithEdgeAttrs forward in one kernel invocation.

    refs (identity path):  mask, wslab(bf16), fslab(f32), edge_attr, node_out, edge_out
    refs (general path):   x, mask, wslab, fslab, edge_attr, node_out, edge_out

    mask:  (H*N, N) f32 additive softmax bias (0 on edge j->i / self loop, -1e30 else)
    wslab: bf16 row-packed [w1cat | w2cat | we1 | we2]
    fslab: f32  row-packed [b1 | b2 | be1 | be2 | score_base1 | colmask]
    """
    if x_is_identity:
        (mask_ref, wslab_ref, fslab_ref, eattr_ref,
         node_out_ref, edge_out_ref) = refs
        x_ref = None
    else:
        (x_ref, mask_ref, wslab_ref, fslab_ref, eattr_ref,
         node_out_ref, edge_out_ref) = refs

    n, heads, f_out = dims["n"], dims["heads"], dims["f_out"]
    f_in, hidden = dims["f_in"], dims["hidden"]
    edge_dim, mlp_hidden = dims["edge_dim"], dims["mlp_hidden"]
    hfo = heads * f_out

    def leaky_relu(v):
        return jnp.where(v > 0, v, negative_slope * v)

    def row_softmax(scores):
        # Softmax over the lane (last) axis; one pass covers every head row.
        m = jnp.max(scores, axis=-1, keepdims=True)
        p = jnp.exp(scores - m)
        inv = pl.reciprocal(jnp.sum(p, axis=-1, keepdims=True), approx=True)
        return p * inv

    mask1 = mask_ref[...]                               # (H*N, N) f32, 0 / -1e30

    # ----------------------- gat1 (H heads, concat=True) --------------------
    if x_is_identity:
        # x == I  =>  feat1 == folded W1, logits == (W @ a) rows; their
        # broadcast sum is parameter-only and precomputed on the host.
        feat1 = wslab_ref[pl.ds(dims["w1_r"], n), pl.ds(0, hfo)]          # bf16
        score_base1 = fslab_ref[pl.ds(dims["sb_r"], heads * n), pl.ds(0, n)]
    else:
        w1cat = wslab_ref[pl.ds(dims["w1_r"], f_in), pl.ds(0, hfo + 2 * heads)]
        f1cat = jnp.dot(x_ref[...].astype(jnp.bfloat16), w1cat,
                        preferred_element_type=jnp.float32)  # (N, H*F_out + 2H)
        feat1 = f1cat[:, :hfo].astype(jnp.bfloat16)
        e_src1 = f1cat[:, hfo:hfo + heads]                   # (N, H)
        e_dst1 = f1cat[:, hfo + heads:hfo + 2 * heads]       # (N, H)
        # (H*N, N) score base: row h*N+i, col j  ->  e_dst[i, h] + e_src[j, h]
        score_base1 = jnp.concatenate(
            [e_dst1[:, h:h + 1] + jnp.transpose(e_src1[:, h:h + 1])
             for h in range(heads)], axis=0)

    alpha1 = row_softmax(leaky_relu(score_base1) + mask1)    # (H*N, N) f32

    # One aggregation matmul for every head at once; keep only each head's own
    # F_out-wide column block (precomputed 0/1 mask), then fold the H row
    # blocks together -> concat(head) layout directly, no lane concatenate.
    agg = jnp.dot(alpha1.astype(jnp.bfloat16), feat1,
                  preferred_element_type=jnp.float32)         # (H*N, H*F_out)
    agg = agg * fslab_ref[pl.ds(dims["cm_r"], heads * n), pl.ds(0, hfo)]
    h1 = agg[0:n, :]
    for h in range(1, heads):
        h1 = h1 + agg[h * n:(h + 1) * n, :]
    h1 = h1 + fslab_ref[pl.ds(dims["b1_r"], 1), pl.ds(0, hfo)]
    # ELU (exp(min(x,0)) keeps the dead branch finite).  The inter-layer
    # F.dropout is the identity in eval mode.
    h1 = jnp.where(h1 > 0.0, h1, jnp.exp(jnp.minimum(h1, 0.0)) - 1.0)

    # --------------------- gat2 (1 head, concat=False) ----------------------
    w2cat = wslab_ref[pl.ds(dims["w2_r"], hfo), pl.ds(0, hidden + 2)]
    f2cat = jnp.dot(h1.astype(jnp.bfloat16), w2cat,
                    preferred_element_type=jnp.float32)       # (N, hidden + 2)
    feat2 = f2cat[:, :hidden]
    e_src2 = f2cat[:, hidden:hidden + 1]
    e_dst2 = f2cat[:, hidden + 1:hidden + 2]
    scores2 = leaky_relu(e_dst2 + jnp.transpose(e_src2)) + mask1[0:n, :]
    alpha2 = row_softmax(scores2)
    node = jnp.dot(alpha2.astype(jnp.bfloat16), feat2.astype(jnp.bfloat16),
                   preferred_element_type=jnp.float32)
    node_out_ref[...] = node + fslab_ref[pl.ds(dims["b2_r"], 1), pl.ds(0, hidden)]

    # ------------- edge_mlp: Linear -> ReLU -> (Dropout=id) -> Linear -------
    we1 = wslab_ref[pl.ds(dims["we1_r"], edge_dim), pl.ds(0, mlp_hidden)]
    we2 = wslab_ref[pl.ds(dims["we2_r"], mlp_hidden), pl.ds(0, hidden)]
    eh = (jnp.dot(eattr_ref[...].astype(jnp.bfloat16), we1,
                  preferred_element_type=jnp.float32)
          + fslab_ref[pl.ds(dims["be1_r"], 1), pl.ds(0, mlp_hidden)])
    eh = jnp.maximum(eh, 0.0)
    edge_out_ref[...] = (jnp.dot(eh.astype(jnp.bfloat16), we2,
                                 preferred_element_type=jnp.float32)
                         + fslab_ref[pl.ds(dims["be2_r"], 1), pl.ds(0, hidden)])


# ----------------------------------------------------------------------------
# Wrapper (pallas_call plumbing)
# ----------------------------------------------------------------------------
def gat_encoder_with_edge_attrs(pp, mask_bias, edge_attr, x=None):
    """Fused forward (eval mode).  `pp` from prepare_params, `mask_bias` from
    build_mask_bias (both one-time for the static graph).  If x is None the
    identity-features fast path is used (the module always feeds torch.eye(N))."""
    dims = pp["dims"]
    n, hidden = dims["n"], dims["hidden"]
    e = edge_attr.shape[0]
    x_is_identity = x is None
    if x_is_identity:
        assert pp["supports_identity"], "identity path requires f_in == num_nodes"

    kernel = functools.partial(_gat_encoder_fused_kernel, dims=dims,
                               x_is_identity=x_is_identity, negative_slope=0.2)
    vmem = pl.BlockSpec(memory_space=pltpu.MemorySpace.VMEM)
    inputs = (mask_bias, pp["wslab"], pp["fslab"], edge_attr)
    if not x_is_identity:
        inputs = (x,) + inputs

    node_out, edge_out = pl.pallas_call(
        kernel,
        out_shape=(jax.ShapeDtypeStruct((n, hidden), jnp.float32),
                   jax.ShapeDtypeStruct((e, hidden), jnp.float32)),
        in_specs=[vmem] * len(inputs),
        out_specs=(vmem, vmem),
    )(*inputs)
    return node_out, edge_out


# ----------------------------------------------------------------------------
# One-time host-side preprocessing (static graph / fixed params)
# ----------------------------------------------------------------------------
def _pack_rows(pieces, dtype, row_align):
    """Zero-pad each 2-D piece to a shared lane width (multiple of 128) and a
    row-aligned block, stack along rows.  Returns (slab, row_offsets)."""
    pieces = [np.asarray(p, np.float32) for p in pieces]
    width = int(np.ceil(max(p.shape[1] for p in pieces) / 128.0) * 128)
    blocks, offsets, r = [], [], 0
    for p in pieces:
        nr = int(np.ceil(p.shape[0] / float(row_align)) * row_align)
        blk = np.zeros((nr, width), np.float32)
        blk[:p.shape[0], :p.shape[1]] = p
        blocks.append(blk)
        offsets.append(r)
        r += nr
    slab = np.concatenate(blocks, axis=0)
    return jnp.asarray(slab).astype(dtype), offsets


def prepare_params(params, num_nodes):
    """Fold the module parameters into two slabs (one bf16, one f32), with the
    attention-logit columns (W @ a) folded into the bf16 weight matrices."""
    p = {k: np.asarray(v, np.float32) for k, v in params.items()}
    heads, f_in, f_out = p["w1"].shape
    hidden = p["w2"].shape[-1]
    edge_dim, mlp_hidden = p["we1"].shape
    n = int(num_nodes)
    hfo = heads * f_out

    # gat1: heads folded head-major along lanes (PyG concat layout), plus the
    # logit columns W1 @ a_src / W1 @ a_dst  ->  (f_in, H*F_out + 2H).
    w1f = np.transpose(p["w1"], (1, 0, 2)).reshape(f_in, hfo)
    wa_src1 = np.einsum("hif,hf->ih", p["w1"], p["asrc1"][:, 0, :])   # (f_in, H)
    wa_dst1 = np.einsum("hif,hf->ih", p["w1"], p["adst1"][:, 0, :])
    w1cat = np.concatenate([w1f, wa_src1, wa_dst1], axis=-1)
    b1f = np.transpose(p["bias1"], (1, 0, 2)).reshape(1, hfo)

    # gat2 (single head): weight plus its two logit columns -> (H*F_out, hidden+2).
    w2 = p["w2"][0]
    w2cat = np.concatenate([w2, w2 @ p["asrc2"][0].T, w2 @ p["adst2"][0].T], axis=-1)
    b2f = p["bias2"][0]

    wslab, (w1_r, w2_r, we1_r, we2_r) = _pack_rows(
        [w1cat, w2cat, p["we1"], p["we2"]], jnp.bfloat16, row_align=16)

    # Identity-x fast path: the logit broadcast-sum is parameter-only, so
    # precompute score_base1[h*N+i, j] = e_dst[i,h] + e_src[j,h] on the host.
    supports_identity = (f_in == n)
    if supports_identity:
        score_base1 = (wa_dst1.T[:, :, None] + wa_src1.T[:, None, :]).reshape(heads * n, n)
    else:
        score_base1 = np.zeros((heads * n, n), np.float32)

    # 0/1 mask keeping head h's own F_out-wide column block for row block h.
    col_head = np.repeat(np.arange(heads), f_out)
    row_head = np.repeat(np.arange(heads), n)
    colmask = (row_head[:, None] == col_head[None, :]).astype(np.float32)

    fslab, (b1_r, b2_r, be1_r, be2_r, sb_r, cm_r) = _pack_rows(
        [b1f, b2f, p["be1"], p["be2"], score_base1, colmask],
        jnp.float32, row_align=8)

    dims = dict(n=n, f_in=int(f_in), heads=int(heads), f_out=int(f_out),
                hidden=int(hidden), edge_dim=int(edge_dim),
                mlp_hidden=int(mlp_hidden),
                w1_r=w1_r, w2_r=w2_r, we1_r=we1_r, we2_r=we2_r,
                b1_r=b1_r, b2_r=b2_r, be1_r=be1_r, be2_r=be2_r,
                sb_r=sb_r, cm_r=cm_r)
    return {"wslab": wslab, "fslab": fslab, "dims": dims,
            "supports_identity": supports_identity}


def build_mask_bias(edge_index, num_nodes, heads):
    """Additive softmax bias: 0 where edge j->i exists (or i == j, the PyG
    default self loop), -1e30 elsewhere; tiled per head along the rows so the
    kernel just adds it.  Built once for the static graph."""
    ei = np.asarray(edge_index)
    adj = np.zeros((num_nodes, num_nodes), np.bool_)
    adj[ei[1], ei[0]] = True
    np.fill_diagonal(adj, True)
    bias = np.where(adj, 0.0, -1e30).astype(np.float32)
    return jnp.asarray(np.tile(bias, (heads, 1)))             # (heads*N, N)


# ----------------------------------------------------------------------------
# Pure-JAX f32 reference (for correctness checking)
# ----------------------------------------------------------------------------
def gat_encoder_reference(params, x, edge_index, edge_attr, negative_slope=0.2):
    n = x.shape[0]
    ei = np.asarray(edge_index)
    adj = np.zeros((n, n), np.bool_)
    adj[ei[1], ei[0]] = True
    np.fill_diagonal(adj, True)
    adj = jnp.asarray(adj)

    def gat_layer(feat_in, w, a_src, a_dst, bias):
        outs = []
        for h in range(w.shape[0]):
            feat = feat_in @ w[h]
            e_src = feat @ a_src[h, 0]
            e_dst = feat @ a_dst[h, 0]
            s = e_dst[:, None] + e_src[None, :]
            s = jnp.where(s > 0, s, negative_slope * s)
            s = jnp.where(adj, s, -jnp.inf)
            alpha = jax.nn.softmax(s, axis=-1)
            outs.append(alpha @ feat + bias[h, 0])
        return outs

    h1 = jnp.concatenate(gat_layer(x, params["w1"], params["asrc1"],
                                   params["adst1"], params["bias1"]), axis=-1)
    h1 = jax.nn.elu(h1)
    # gat2: heads=1, concat=False -> mean over one head == the head.
    node = gat_layer(h1, params["w2"], params["asrc2"],
                     params["adst2"], params["bias2"])[0]
    eh = jnp.maximum(edge_attr @ params["we1"] + params["be1"], 0.0)
    edge = eh @ params["we2"] + params["be2"]
    return node, edge


# ----------------------------------------------------------------------------
# Deterministic parameter initialization
# ----------------------------------------------------------------------------
def init_params(key, in_channels, hidden_channels, edge_attr_dim, heads):
    ks = jax.random.split(key, 12)
    g = lambda k, shape, fan: (jax.random.normal(k, shape, jnp.float32)
                               * (1.0 / jnp.sqrt(jnp.float32(fan))))
    gat1_in, gat1_out = in_channels, hidden_channels
    gat2_in, gat2_out = hidden_channels * heads, hidden_channels
    return {
        # gat1 (heads=H)
        "w1":    g(ks[0], (heads, gat1_in, gat1_out), gat1_in),
        "asrc1": g(ks[1], (heads, 1, gat1_out), gat1_out),
        "adst1": g(ks[2], (heads, 1, gat1_out), gat1_out),
        "bias1": jnp.zeros((heads, 1, gat1_out), jnp.float32),
        # gat2 (heads=1, concat=False)
        "w2":    g(ks[3], (1, gat2_in, gat2_out), gat2_in),
        "asrc2": g(ks[4], (1, 1, gat2_out), gat2_out),
        "adst2": g(ks[5], (1, 1, gat2_out), gat2_out),
        "bias2": jnp.zeros((1, 1, gat2_out), jnp.float32),
        # edge_mlp: Linear(edge_attr_dim, 32) -> ReLU -> Dropout -> Linear(32, hidden)
        "we1":   g(ks[6], (edge_attr_dim, 32), edge_attr_dim),
        "be1":   g(ks[7], (1, 32), 32),
        "we2":   g(ks[8], (32, hidden_channels), 32),
        "be2":   g(ks[9], (1, hidden_channels), hidden_channels),
    }


# ----------------------------------------------------------------------------
if __name__ == "__main__":
    key = jax.random.PRNGKey(0)
    k_edge, k_param = jax.random.split(key)

    # Small synthetic graph (mirrors x = torch.eye(num_nodes) in the module).
    N = 16                       # num nodes; in_channels == N (one-hot features)
    HIDDEN = 8
    HEADS = 4
    EDGE_ATTR_DIM = 6

    # Deterministic edge list: ring + chords (directed, no duplicates).
    edges = [(i, (i + 1) % N) for i in range(N)] + \
            [(i, (i + 5) % N) for i in range(0, N, 2)]
    edge_index = np.array(edges, dtype=np.int32).T               # (2, E)
    E = edge_index.shape[1]

    x = jnp.eye(N, dtype=jnp.float32)                            # (N, N)
    edge_attr = jax.random.normal(k_edge, (E, EDGE_ATTR_DIM), jnp.float32)

    params = init_params(k_param, in_channels=N, hidden_channels=HIDDEN,
                         edge_attr_dim=EDGE_ATTR_DIM, heads=HEADS)
    pp = prepare_params(params, num_nodes=N)      # one-time slab packing
    mask_bias = build_mask_bias(edge_index, N, HEADS)  # one-time additive mask

    # Identity-features fast path (what the module actually does), and the
    # general path (x passed explicitly) — both go through the fused kernel.
    node_id, edge_id = gat_encoder_with_edge_attrs(pp, mask_bias, edge_attr)
    node_gen, edge_gen = gat_encoder_with_edge_attrs(pp, mask_bias, edge_attr, x=x)
    jax.block_until_ready((node_id, edge_id, node_gen, edge_gen))

    node_ref, edge_ref = gat_encoder_reference(params, x, edge_index, edge_attr)

    for name, got, ref in [("node/identity", node_id, node_ref),
                           ("node/general", node_gen, node_ref),
                           ("edge/identity", edge_id, edge_ref),
                           ("edge/general", edge_gen, edge_ref)]:
        assert got.shape == ref.shape, (name, got.shape, ref.shape)
        assert bool(jnp.all(jnp.isfinite(got))), name
        err = float(jnp.max(jnp.abs(got - ref)))
        assert err < 5e-2, f"{name}: max abs err {err}"

    print("KERNEL_OK")
</pallas_src>

<mosaic_0001>
module attributes {stable_mosaic.version = 11 : i64} {
  func.func @_gat_encoder_fused_kernel(%arg0: memref<64x16xf32, #tpu.memory_space<vmem>>, %arg1: memref<96x128xbf16, #tpu.memory_space<vmem>>, %arg2: memref<160x128xf32, #tpu.memory_space<vmem>>, %arg3: memref<24x6xf32, #tpu.memory_space<vmem>>, %arg4: memref<16x8xf32, #tpu.memory_space<vmem>>, %arg5: memref<24x8xf32, #tpu.memory_space<vmem>>) attributes {dimension_semantics = [], scalar_prefetch = 0 : i64, scratch_operands = 0 : i64, tpu.core_type = #tpu.core_type<tc>} {
    %c0 = arith.constant 0 : index
    %c0_0 = arith.constant 0 : index
    %0 = vector.load %arg0[%c0, %c0_0] : memref<64x16xf32, #tpu.memory_space<vmem>>, vector<64x16xf32>
    %c0_1 = arith.constant 0 : index
    %c0_2 = arith.constant 0 : index
    %1 = vector.load %arg1[%c0_1, %c0_2] : memref<96x128xbf16, #tpu.memory_space<vmem>>, vector<16x32xbf16>
    %c32 = arith.constant 32 : index
    %c0_3 = arith.constant 0 : index
    %2 = vector.load %arg2[%c32, %c0_3] : memref<160x128xf32, #tpu.memory_space<vmem>>, vector<64x16xf32>
    %cst = arith.constant 0.000000e+00 : f32
    %3 = vector.broadcast %cst : f32 to vector<64x16xf32>
    %4 = arith.cmpf ogt, %2, %3 : vector<64x16xf32>
    %cst_4 = arith.constant 2.000000e-01 : f32
    %5 = vector.broadcast %cst_4 : f32 to vector<64x16xf32>
    %6 = arith.mulf %5, %2 : vector<64x16xf32>
    %7 = arith.select %4, %2, %6 : vector<64x16xi1>, vector<64x16xf32>
    %8 = arith.addf %7, %0 : vector<64x16xf32>
    %cst_5 = arith.constant dense<0xFF800000> : vector<64xf32>
    %9 = vector.multi_reduction <maximumf>, %8, %cst_5 [1] : vector<64x16xf32> to vector<64xf32>
    %10 = vector.shape_cast %9 : vector<64xf32> to vector<64x1xf32>
    %11 = vector.broadcast %10 : vector<64x1xf32> to vector<64x16xf32>
    %12 = arith.subf %8, %11 : vector<64x16xf32>
    %13 = math.exp %12 : vector<64x16xf32>
    %cst_6 = arith.constant dense<0.000000e+00> : vector<64xf32>
    %14 = vector.multi_reduction <add>, %13, %cst_6 [1] : vector<64x16xf32> to vector<64xf32>
    %15 = vector.shape_cast %14 : vector<64xf32> to vector<64x1xf32>
    %16 = tpu.reciprocal %15 {approx = true} : vector<64x1xf32> -> vector<64x1xf32>
    %17 = vector.broadcast %16 : vector<64x1xf32> to vector<64x16xf32>
    %18 = arith.mulf %13, %17 : vector<64x16xf32>
    %19 = arith.truncf %18 : vector<64x16xf32> to vector<64x16xbf16>
    %cst_7 = arith.constant dense<0.000000e+00> : vector<64x32xf32>
    %20 = tpu.matmul %19, %1, %cst_7 {dimension_numbers = #tpu.dot_dimension_numbers<[1], [0], [0], [1], [0, 0, 1, 1], [], []>} : vector<64x16xbf16>, vector<16x32xbf16>, vector<64x32xf32> -> vector<64x32xf32>
    %c96 = arith.constant 96 : index
    %c0_8 = arith.constant 0 : index
    %21 = vector.load %arg2[%c96, %c0_8] : memref<160x128xf32, #tpu.memory_space<vmem>>, vector<64x32xf32>
    %22 = arith.mulf %20, %21 : vector<64x32xf32>
    %23 = vector.extract_strided_slice %22 {offsets = [0, 0], sizes = [16, 32], strides = [1, 1]} : vector<64x32xf32> to vector<16x32xf32>
    %24 = vector.extract_strided_slice %22 {offsets = [16, 0], sizes = [16, 32], strides = [1, 1]} : vector<64x32xf32> to vector<16x32xf32>
    %25 = arith.addf %23, %24 : vector<16x32xf32>
    %26 = vector.extract_strided_slice %22 {offsets = [32, 0], sizes = [16, 32], strides = [1, 1]} : vector<64x32xf32> to vector<16x32xf32>
    %27 = arith.addf %25, %26 : vector<16x32xf32>
    %28 = vector.extract_strided_slice %22 {offsets = [48, 0], sizes = [16, 32], strides = [1, 1]} : vector<64x32xf32> to vector<16x32xf32>
    %29 = arith.addf %27, %28 : vector<16x32xf32>
    %c0_9 = arith.constant 0 : index
    %c0_10 = arith.constant 0 : index
    %30 = vector.load %arg2[%c0_9, %c0_10] : memref<160x128xf32, #tpu.memory_space<vmem>>, vector<1x32xf32>
    %31 = vector.broadcast %30 : vector<1x32xf32> to vector<16x32xf32>
    %32 = arith.addf %29, %31 : vector<16x32xf32>
    %cst_11 = arith.constant 0.000000e+00 : f32
    %33 = vector.broadcast %cst_11 : f32 to vector<16x32xf32>
    %34 = arith.cmpf ogt, %32, %33 : vector<16x32xf32>
    %cst_12 = arith.constant 0.000000e+00 : f32
    %35 = vector.broadcast %cst_12 : f32 to vector<16x32xf32>
    %36 = arith.minimumf %32, %35 : vector<16x32xf32>
    %37 = math.exp %36 : vector<16x32xf32>
    %cst_13 = arith.constant 1.000000e+00 : f32
    %38 = vector.broadcast %cst_13 : f32 to vector<16x32xf32>
    %39 = arith.subf %37, %38 : vector<16x32xf32>
    %40 = arith.select %34, %32, %39 : vector<16x32xi1>, vector<16x32xf32>
    %c16 = arith.constant 16 : index
    %c0_14 = arith.constant 0 : index
    %41 = vector.load %arg1[%c16, %c0_14] : memref<96x128xbf16, #tpu.memory_space<vmem>>, vector<32x10xbf16>
    %42 = arith.truncf %40 : vector<16x32xf32> to vector<16x32xbf16>
    %cst_15 = arith.constant dense<0.000000e+00> : vector<16x10xf32>
    %43 = tpu.matmul %42, %41, %cst_15 {dimension_numbers = #tpu.dot_dimension_numbers<[1], [0], [0], [1], [0, 0, 1, 1], [], []>} : vector<16x32xbf16>, vector<32x10xbf16>, vector<16x10xf32> -> vector<16x10xf32>
    %44 = vector.extract_strided_slice %43 {offsets = [0, 0], sizes = [16, 8], strides = [1, 1]} : vector<16x10xf32> to vector<16x8xf32>
    %45 = vector.extract_strided_slice %43 {offsets = [0, 8], sizes = [16, 1], strides = [1, 1]} : vector<16x10xf32> to vector<16x1xf32>
    %46 = vector.extract_strided_slice %43 {offsets = [0, 9], sizes = [16, 1], strides = [1, 1]} : vector<16x10xf32> to vector<16x1xf32>
    %47 = tpu.transpose %45, [1, 0] : vector<16x1xf32> -> vector<1x16xf32>
    %48 = vector.broadcast %46 : vector<16x1xf32> to vector<16x16xf32>
    %49 = vector.broadcast %47 : vector<1x16xf32> to vector<16x16xf32>
    %50 = arith.addf %48, %49 : vector<16x16xf32>
    %cst_16 = arith.constant 0.000000e+00 : f32
    %51 = vector.broadcast %cst_16 : f32 to vector<16x16xf32>
    %52 = arith.cmpf ogt, %50, %51 : vector<16x16xf32>
    %cst_17 = arith.constant 2.000000e-01 : f32
    %53 = vector.broadcast %cst_17 : f32 to vector<16x16xf32>
    %54 = arith.mulf %53, %50 : vector<16x16xf32>
    %55 = arith.select %52, %50, %54 : vector<16x16xi1>, vector<16x16xf32>
    %56 = vector.extract_strided_slice %0 {offsets = [0, 0], sizes = [16, 16], strides = [1, 1]} : vector<64x16xf32> to vector<16x16xf32>
    %57 = arith.addf %55, %56 : vector<16x16xf32>
    %cst_18 = arith.constant dense<0xFF800000> : vector<16xf32>
    %58 = vector.multi_reduction <maximumf>, %57, %cst_18 [1] : vector<16x16xf32> to vector<16xf32>
    %59 = vector.shape_cast %58 : vector<16xf32> to vector<16x1xf32>
    %60 = vector.broadcast %59 : vector<16x1xf32> to vector<16x16xf32>
    %61 = arith.subf %57, %60 : vector<16x16xf32>
    %62 = math.exp %61 : vector<16x16xf32>
    %cst_19 = arith.constant dense<0.000000e+00> : vector<16xf32>
    %63 = vector.multi_reduction <add>, %62, %cst_19 [1] : vector<16x16xf32> to vector<16xf32>
    %64 = vector.shape_cast %63 : vector<16xf32> to vector<16x1xf32>
    %65 = tpu.reciprocal %64 {approx = true} : vector<16x1xf32> -> vector<16x1xf32>
    %66 = vector.broadcast %65 : vector<16x1xf32> to vector<16x16xf32>
    %67 = arith.mulf %62, %66 : vector<16x16xf32>
    %68 = arith.truncf %67 : vector<16x16xf32> to vector<16x16xbf16>
    %69 = arith.truncf %44 : vector<16x8xf32> to vector<16x8xbf16>
    %cst_20 = arith.constant dense<0.000000e+00> : vector<16x8xf32>
    %70 = tpu.matmul %68, %69, %cst_20 {dimension_numbers = #tpu.dot_dimension_numbers<[1], [0], [0], [1], [0, 0, 1, 1], [], []>} : vector<16x16xbf16>, vector<16x8xbf16>, vector<16x8xf32> -> vector<16x8xf32>
    %c8 = arith.constant 8 : index
    %c0_21 = arith.constant 0 : index
    %71 = vector.load %arg2[%c8, %c0_21] : memref<160x128xf32, #tpu.memory_space<vmem>>, vector<1x8xf32>
    %72 = vector.broadcast %71 : vector<1x8xf32> to vector<16x8xf32>
    %73 = arith.addf %70, %72 : vector<16x8xf32>
    %c0_22 = arith.constant 0 : index
    %c0_23 = arith.constant 0 : index
    %74 = vector.load %arg4[%c0_22, %c0_23] : memref<16x8xf32, #tpu.memory_space<vmem>>, vector<16x8xf32>
    tpu.vector_store %arg4[%c0_22, %c0_23], %73 {strides = array<i32>} : memref<16x8xf32, #tpu.memory_space<vmem>>, vector<16x8xf32>,
    %c48 = arith.constant 48 : index
    %c0_24 = arith.constant 0 : index
    %75 = vector.load %arg1[%c48, %c0_24] : memref<96x128xbf16, #tpu.memory_space<vmem>>, vector<6x32xbf16>
    %c64 = arith.constant 64 : index
    %c0_25 = arith.constant 0 : index
    %76 = vector.load %arg1[%c64, %c0_25] : memref<96x128xbf16, #tpu.memory_space<vmem>>, vector<32x8xbf16>
    %c0_26 = arith.constant 0 : index
    %c0_27 = arith.constant 0 : index
    %77 = vector.load %arg3[%c0_26, %c0_27] : memref<24x6xf32, #tpu.memory_space<vmem>>, vector<24x6xf32>
    %78 = arith.truncf %77 : vector<24x6xf32> to vector<24x6xbf16>
    %cst_28 = arith.constant dense<0.000000e+00> : vector<24x32xf32>
    %79 = tpu.matmul %78, %75, %cst_28 {dimension_numbers = #tpu.dot_dimension_numbers<[1], [0], [0], [1], [0, 0, 1, 1], [], []>} : vector<24x6xbf16>, vector<6x32xbf16>, vector<24x32xf32> -> vector<24x32xf32>
    %c16_29 = arith.constant 16 : index
    %c0_30 = arith.constant 0 : index
    %80 = vector.load %arg2[%c16_29, %c0_30] : memref<160x128xf32, #tpu.memory_space<vmem>>, vector<1x32xf32>
    %81 = vector.broadcast %80 : vector<1x32xf32> to vector<24x32xf32>
    %82 = arith.addf %79, %81 : vector<24x32xf32>
    %cst_31 = arith.constant 0.000000e+00 : f32
    %83 = vector.broadcast %cst_31 : f32 to vector<24x32xf32>
    %84 = arith.maximumf %82, %83 : vector<24x32xf32>
    %85 = arith.truncf %84 : vector<24x32xf32> to vector<24x32xbf16>
    %cst_32 = arith.constant dense<0.000000e+00> : vector<24x8xf32>
    %86 = tpu.matmul %85, %76, %cst_32 {dimension_numbers = #tpu.dot_dimension_numbers<[1], [0], [0], [1], [0, 0, 1, 1], [], []>} : vector<24x32xbf16>, vector<32x8xbf16>, vector<24x8xf32> -> vector<24x8xf32>
    %c24 = arith.constant 24 : index
    %c0_33 = arith.constant 0 : index
    %87 = vector.load %arg2[%c24, %c0_33] : memref<160x128xf32, #tpu.memory_space<vmem>>, vector<1x8xf32>
    %88 = vector.broadcast %87 : vector<1x8xf32> to vector<24x8xf32>
    %89 = arith.addf %86, %88 : vector<24x8xf32>
    %c0_34 = arith.constant 0 : index
    %c0_35 = arith.constant 0 : index
    %90 = vector.load %arg5[%c0_34, %c0_35] : memref<24x8xf32, #tpu.memory_space<vmem>>, vector<24x8xf32>
    tpu.vector_store %arg5[%c0_34, %c0_35], %89 {strides = array<i32>} : memref<24x8xf32, #tpu.memory_space<vmem>>, vector<24x8xf32>,
    return
  }
}

</mosaic_0001>

<llo_original>
// kernel: tpu_custom_call.1
$region0: #{tpu_custom_call.1}
  #allocation0 [shape = 'u32[]', space=smem, size = 0x4, offset = 0x4, fixed_abs, tag = 'smem constant byte address 0x4 - core index']
  #allocation1 [shape = 'u32[144,128]{1,0:T(1,128)}', space=vmem, size = 0x12000, scoped, tag = 'internal scratch']
  %s0 = inlined_call_operand.vmem [shape: f32[64,16], index: 0, kind: input, shape index: {}]
  %s1 = inlined_call_operand.vmem [shape: bf16[96,128], index: 1, kind: input, shape index: {}]
  %s2 = inlined_call_operand.hbm [shape: f32[160,128], index: 2, kind: input, shape index: {}]
  %s3 = inlined_call_operand.vmem [shape: f32[24,6], index: 3, kind: input, shape index: {}]
  %s4 = inlined_call_operand.vmem [shape: f32[16,8], index: 4, kind: output, shape index: {0}]
  %s5 = inlined_call_operand.vmem [shape: f32[24,8], index: 5, kind: output, shape index: {1}]
  %6 = xla_tuple %s4, %s5
  %s7 = sld [smem:[#allocation0]]
  $region38: #{tpu_custom_call.1} parent=0
    _
  %s9 = ssub.s32 1, %s7
  %s10 = scalar_select 0, %s9, %s7
  $region1: #{tpu_custom_call.1} parent=0
    #allocation2 [shape = 'u8[81920]{0}', space=vmem, size = 0x14000, scoped, tag = 'input window, operand 2, single buffered']
    #allocation3 [shape = 's32[1]{0}', space=sflag, size = 0x4, scoped, tag = 'scoped memory for tpu_custom_call.1']
    %11 = vsyncpa [#allocation3], 0
    // Predicated region
    $region2: #{tpu_custom_call.1} parent=1 // pred_check
      _
    $region3: #{tpu_custom_call.1} parent=1 // pred_check_branch
      %13 = sbr.rel (0) target = $region5
    $region4: #{tpu_custom_call.1} parent=1 // pred_region
      _
    $region5: #{tpu_custom_call.1} parent=1 // pred_fallthru
      _
    // Predicated region
    $region6: #{tpu_custom_call.1} parent=1 // pred_check
      _
    $region7: #{tpu_custom_call.1} parent=1 // pred_check_branch
      %15 = sbr.rel (0) target = $region9
    $region8: #{tpu_custom_call.1} parent=1 // pred_region
      _
    $region9: #{tpu_custom_call.1} parent=1 // pred_fallthru
      _
    // Predicated region
    $region10: #{tpu_custom_call.1} parent=1 // pred_check
      _
    $region11: #{tpu_custom_call.1} parent=1 // pred_check_branch
      %17 = sbr.rel (0) target = $region13
    $region12: #{tpu_custom_call.1} parent=1 // pred_region
      %s19 = ssub.s32 2560, 2560
      %20 = vsyncadd [#allocation3], %s19
      %s21 = sshll.u32 [#allocation2], 4
      %s22 = int_to_ptr.vmem [resolvable:$true] %s21
      %27 = dma.hbm_to_vmem [thread:$0]  %s2, 2560, %s22, [#allocation3], 128, 128, 8
    $region13: #{tpu_custom_call.1} parent=1 // pred_fallthru
      _
    // Predicated region
    $region14: #{tpu_custom_call.1} parent=1 // pred_check
      _
    $region15: #{tpu_custom_call.1} parent=1 // pred_check_branch
      %29 = sbr.rel (0) target = $region17
    $region16: #{tpu_custom_call.1} parent=1 // pred_region
      _
    $region17: #{tpu_custom_call.1} parent=1 // pred_fallthru
      _
    // Predicated region
    $region18: #{tpu_custom_call.1} parent=1 // pred_check
      _
    $region19: #{tpu_custom_call.1} parent=1 // pred_check_branch
      %31 = sbr.rel (0) target = $region21
    $region20: #{tpu_custom_call.1} parent=1 // pred_region
      %32 = dma.done [#allocation3], 2560
    $region21: #{tpu_custom_call.1} parent=1 // pred_fallthru
      _
    %v34 = vld [vmem:[%s0] sm:$0xff]
    %v35 = vld [vmem:[%s0 + $0x8] sm:$0xff]
    %v36 = vld [vmem:[%s0 + $0x10] sm:$0xff]
    %v37 = vld [vmem:[%s0 + $0x18] sm:$0xff]
    %v38 = vld [vmem:[%s0 + $0x20] sm:$0xff]
    %v39 = vld [vmem:[%s0 + $0x28] sm:$0xff]
    %v40 = vld [vmem:[%s0 + $0x30] sm:$0xff]
    %v41 = vld [vmem:[%s0 + $0x38] sm:$0xff]
    %v42 = vld [vmem:[%s1] sm:$0xf]
    %v43 = vld [vmem:[%s1 + $0x4] sm:$0xf]
    %v44 = vld [vmem:[#allocation2 + $0x20] sm:$0xff]
    %v45 = vld [vmem:[#allocation2 + $0x28] sm:$0xff]
    %v46 = vld [vmem:[#allocation2 + $0x30] sm:$0xff]
    %v47 = vld [vmem:[#allocation2 + $0x38] sm:$0xff]
    %v48 = vld [vmem:[#allocation2 + $0x40] sm:$0xff]
    %v49 = vld [vmem:[#allocation2 + $0x48] sm:$0xff]
    %v50 = vld [vmem:[#allocation2 + $0x50] sm:$0xff]
    %v51 = vld [vmem:[#allocation2 + $0x58] sm:$0xff]
    %vm52 = vcmp.gt.f32.partialorder %v44, 0.0
    %vm53 = vcmp.gt.f32.partialorder %v45, 0.0
    %vm54 = vcmp.gt.f32.partialorder %v46, 0.0
    %vm55 = vcmp.gt.f32.partialorder %v47, 0.0
    %vm56 = vcmp.gt.f32.partialorder %v48, 0.0
    %vm57 = vcmp.gt.f32.partialorder %v49, 0.0
    %vm58 = vcmp.gt.f32.partialorder %v50, 0.0
    %vm59 = vcmp.gt.f32.partialorder %v51, 0.0
    %v60 = vmul.f32 %v44, 0.2
    %v61 = vmul.f32 %v45, 0.2
    %v62 = vmul.f32 %v46, 0.2
    %v63 = vmul.f32 %v47, 0.2
    %v64 = vmul.f32 %v48, 0.2
    %v65 = vmul.f32 %v49, 0.2
    %v66 = vmul.f32 %v50, 0.2
    %v67 = vmul.f32 %v51, 0.2
    %v68 = vsel %vm52, %v44, %v60
    %v69 = vsel %vm53, %v45, %v61
    %v70 = vsel %vm54, %v46, %v62
    %v71 = vsel %vm55, %v47, %v63
    %v72 = vsel %vm56, %v48, %v64
    %v73 = vsel %vm57, %v49, %v65
    %v74 = vsel %vm58, %v50, %v66
    %v75 = vsel %vm59, %v51, %v67
    %v76 = vadd.f32 %v68, %v34
    %v77 = vadd.f32 %v69, %v35
    %v78 = vadd.f32 %v70, %v36
    %v79 = vadd.f32 %v71, %v37
    %v80 = vadd.f32 %v72, %v38
    %v81 = vadd.f32 %v73, %v39
    %v82 = vadd.f32 %v74, %v40
    %v83 = vadd.f32 %v75, %v41
    %vm84 = vcmask 130048
    %v85 = vsel %vm84, %v76, -inf
    %86 = vmax.xlane.f32.xlu0 %v85
    %v87 = vpop.xlane.xlu0 %86
    %v88 = vsel %vm84, %v77, -inf
    %89 = vmax.xlane.f32.xlu0 %v88
    %v90 = vpop.xlane.xlu0 %89
    %v91 = vsel %vm84, %v78, -inf
    %92 = vmax.xlane.f32.xlu0 %v91
    %v93 = vpop.xlane.xlu0 %92
    %v94 = vsel %vm84, %v79, -inf
    %95 = vmax.xlane.f32.xlu0 %v94
    %v96 = vpop.xlane.xlu0 %95
    %v97 = vsel %vm84, %v80, -inf
    %98 = vmax.xlane.f32.xlu0 %v97
    %v99 = vpop.xlane.xlu0 %98
    %v100 = vsel %vm84, %v81, -inf
    %101 = vmax.xlane.f32.xlu0 %v100
    %v102 = vpop.xlane.xlu0 %101
    %v103 = vsel %vm84, %v82, -inf
    %104 = vmax.xlane.f32.xlu0 %v103
    %v105 = vpop.xlane.xlu0 %104
    %v106 = vsel %vm84, %v83, -inf
    %107 = vmax.xlane.f32.xlu0 %v106
    %v108 = vpop.xlane.xlu0 %107
    %v109 = vsub.f32 %v76, %v87
    %v110 = vsub.f32 %v77, %v90
    %v111 = vsub.f32 %v78, %v93
    %v112 = vsub.f32 %v79, %v96
    %v113 = vsub.f32 %v80, %v99
    %v114 = vsub.f32 %v81, %v102
    %v115 = vsub.f32 %v82, %v105
    %v116 = vsub.f32 %v83, %v108
    %v117 = vmul.f32 %v109, 1.442695
    %v118 = vpow.pop %v117
    %v119 = vmul.f32 %v110, 1.442695
    %v120 = vpow.pop %v119
    %v121 = vmul.f32 %v111, 1.442695
    %v122 = vpow.pop %v121
    %v123 = vmul.f32 %v112, 1.442695
    %v124 = vpow.pop %v123
    %v125 = vmul.f32 %v113, 1.442695
    %v126 = vpow.pop %v125
    %v127 = vmul.f32 %v114, 1.442695
    %v128 = vpow.pop %v127
    %v129 = vmul.f32 %v115, 1.442695
    %v130 = vpow.pop %v129
    %v131 = vmul.f32 %v116, 1.442695
    %v132 = vpow.pop %v131
    %v133 = vsel %vm84, %v118, 0.0
    %134 = vadd.xlane.f32.xlu0 %v133
    %v135 = vpop.xlane.xlu0 %134
    %v136 = vsel %vm84, %v120, 0.0
    %137 = vadd.xlane.f32.xlu0 %v136
    %v138 = vpop.xlane.xlu0 %137
    %v139 = vsel %vm84, %v122, 0.0
    %140 = vadd.xlane.f32.xlu0 %v139
    %v141 = vpop.xlane.xlu0 %140
    %v142 = vsel %vm84, %v124, 0.0
    %143 = vadd.xlane.f32.xlu0 %v142
    %v144 = vpop.xlane.xlu0 %143
    %v145 = vsel %vm84, %v126, 0.0
    %146 = vadd.xlane.f32.xlu0 %v145
    %v147 = vpop.xlane.xlu0 %146
    %v148 = vsel %vm84, %v128, 0.0
    %149 = vadd.xlane.f32.xlu0 %v148
    %v150 = vpop.xlane.xlu0 %149
    %v151 = vsel %vm84, %v130, 0.0
    %152 = vadd.xlane.f32.xlu0 %v151
    %v153 = vpop.xlane.xlu0 %152
    %v154 = vsel %vm84, %v132, 0.0
    %155 = vadd.xlane.f32.xlu0 %v154
    %v156 = vpop.xlane.xlu0 %155
    %v157 = vrcp.pop %v135
    %v158 = vrcp.pop %v138
    %v159 = vrcp.pop %v141
    %v160 = vrcp.pop %v144
    %v161 = vrcp.pop %v147
    %v162 = vrcp.pop %v150
    %v163 = vrcp.pop %v153
    %v164 = vrcp.pop %v156
    %v165 = vmul.f32 %v118, %v157
    %v166 = vmul.f32 %v120, %v158
    %v167 = vmul.f32 %v122, %v159
    %v168 = vmul.f32 %v124, %v160
    %v169 = vmul.f32 %v126, %v161
    %v170 = vmul.f32 %v128, %v162
    %v171 = vmul.f32 %v130, %v163
    %v172 = vmul.f32 %v132, %v164
    %v173 = vpack.c.bf16 %v166, %v165
    %v174 = vpack.c.bf16 %v168, %v167
    %v175 = vpack.c.bf16 %v170, %v169
    %v176 = vpack.c.bf16 %v172, %v171
    %v179 = vunpack.c.l.b16 %v42
    %v180 = vunpack.c.l.b16 %v43
    %v181 = vpack.c.b16 %v180, %v179
    %v184 = vsel %vm84, %v173, 0
    %v187 = vsel %vm84, %v174, 0
    %v190 = vsel %vm84, %v175, 0
    %v193 = vsel %vm84, %v176, 0
    %195 = vmatprep.subr.bf16.mxu0 0
    %196 = vmatpush1.bf16.msra.mxu0 %v181
    %197 = vmatprep.subr.bf16.mxu0 0
    %198 = vmatpush1.bf16.msra.mxu0 0
    %199 = vmatprep.subr.bf16.mxu0 0
    %200 = vmatpush1.bf16.msra.mxu0 0
    %201 = vmatprep.subr.bf16.mxu0 0
    %202 = vmatpush1.bf16.msra.mxu0 0
    %203 = vmatprep.subr.bf16.mxu0 0
    %204 = vmatpush1.bf16.msra.mxu0 0
    %205 = vmatprep.subr.bf16.mxu0 0
    %206 = vmatpush1.bf16.msra.mxu0 0
    %207 = vmatprep.subr.bf16.mxu0 0
    %208 = vmatpush1.bf16.msra.mxu0 0
    %209 = vmatprep.subr.bf16.mxu0 0
    %210 = vmatpush1.bf16.msra.mxu0 0
    %211 = vmatprep.subr.bf16.mxu0 0
    %212 = vmatpush1.bf16.msra.mxu0 0
    %213 = vmatprep.subr.bf16.mxu0 0
    %214 = vmatpush1.bf16.msra.mxu0 0
    %215 = vmatprep.subr.bf16.mxu0 0
    %216 = vmatpush1.bf16.msra.mxu0 0
    %217 = vmatprep.subr.bf16.mxu0 0
    %218 = vmatpush1.bf16.msra.mxu0 0
    %219 = vmatprep.subr.bf16.mxu0 0
    %220 = vmatpush1.bf16.msra.mxu0 0
    %221 = vmatprep.subr.bf16.mxu0 0
    %222 = vmatpush1.bf16.msra.mxu0 0
    %223 = vmatprep.subr.bf16.mxu0 0
    %224 = vmatpush1.bf16.msra.mxu0 0
    %225 = vmatprep.subr.bf16.mxu0 0
    %226 = vmatpush1.bf16.msra.mxu0 0
    %227 = vmatprep.mubr.bf16.mxu0 0
    %228 = vmatmul.mubr.bf16.gmra.mrb[0].mxu0 %v184
    %v229 = vpop.f32.mrb[0].mxu0
    %v230 = vadd.f32 0.0, %v229
    %v231 = vpop.f32.mrb[0].mxu0
    %v232 = vpop.f32.mrb[0].mxu0
    %v233 = vadd.f32 0.0, %v232
    %v234 = vpop.f32.mrb[0].mxu0
    %235 = vmatprep.mubr.bf16.mxu0 0
    %236 = vmatmul.mubr.bf16.gmra.mrb[0].mxu0 %v187
    %v237 = vpop.f32.mrb[0].mxu0
    %v238 = vadd.f32 0.0, %v237
    %v239 = vpop.f32.mrb[0].mxu0
    %v240 = vpop.f32.mrb[0].mxu0
    %v241 = vadd.f32 0.0, %v240
    %v242 = vpop.f32.mrb[0].mxu0
    %243 = vmatprep.mubr.bf16.mxu0 0
    %244 = vmatmul.mubr.bf16.gmra.mrb[0].mxu0 %v190
    %v245 = vpop.f32.mrb[0].mxu0
    %v246 = vadd.f32 0.0, %v245
    %v247 = vpop.f32.mrb[0].mxu0
    %v248 = vpop.f32.mrb[0].mxu0
    %v249 = vadd.f32 0.0, %v248
    %v250 = vpop.f32.mrb[0].mxu0
    %251 = vmatprep.mubr.bf16.mxu0 0
    %252 = vmatmul.mubr.bf16.gmra.mrb[0].mxu0 %v193
    %v253 = vpop.f32.mrb[0].mxu0
    %v254 = vadd.f32 0.0, %v253
    %v255 = vpop.f32.mrb[0].mxu0
    %v256 = vpop.f32.mrb[0].mxu0
    %v257 = vadd.f32 0.0, %v256
    %v258 = vpop.f32.mrb[0].mxu0
    %259 = vdwg.mxu0
    %v260 = vld [vmem:[#allocation2 + $0x60] sm:$0xff]
    %v261 = vld [vmem:[#allocation2 + $0x68] sm:$0xff]
    %v262 = vld [vmem:[#allocation2 + $0x70] sm:$0xff]
    %v263 = vld [vmem:[#allocation2 + $0x78] sm:$0xff]
    %v264 = vld [vmem:[#allocation2 + $0x80] sm:$0xff]
    %v265 = vld [vmem:[#allocation2 + $0x88] sm:$0xff]
    %v266 = vld [vmem:[#allocation2 + $0x90] sm:$0xff]
    %v267 = vld [vmem:[#allocation2 + $0x98] sm:$0xff]
    %v268 = vmul.f32 %v230, %v260
    %v269 = vmul.f32 %v233, %v261
    %v270 = vmul.f32 %v238, %v262
    %v271 = vmul.f32 %v241, %v263
    %v272 = vmul.f32 %v246, %v264
    %v273 = vmul.f32 %v249, %v265
    %v274 = vmul.f32 %v254, %v266
    %v275 = vmul.f32 %v257, %v267
    %v276 = vadd.f32 %v268, %v270
    %v277 = vadd.f32 %v269, %v271
    %v278 = vadd.f32 %v276, %v272
    %v279 = vadd.f32 %v277, %v273
    %v280 = vadd.f32 %v278, %v274
    %v281 = vadd.f32 %v279, %v275
    %v282 = vld [vmem:[#allocation2] sm:$0x1]
    %v283 = vlaneseq
    %v284 = vshrl.u32 %v283, 7
    %v285 = vsub.s32 0, %v284
    %v286 = vrot.slane %v282, %v285
    %v287 = vadd.f32 %v280, %v286
    %v288 = vadd.f32 %v281, %v286
    %vm289 = vcmp.gt.f32.partialorder %v287, 0.0
    %vm290 = vcmp.gt.f32.partialorder %v288, 0.0
    %v291 = vmin.f32 %v287, 0.0
    %v292 = vmin.f32 %v288, 0.0
    %v293 = vmul.f32 %v291, 1.442695
    %v294 = vpow.pop %v293
    %v295 = vmul.f32 %v292, 1.442695
    %v296 = vpow.pop %v295
    %v297 = vsub.f32 %v294, 1.0
    %v298 = vsub.f32 %v296, 1.0
    %v299 = vsel %vm289, %v287, %v297
    %v300 = vsel %vm290, %v288, %v298
    %v301 = vld [vmem:[%s1 + $0x8] sm:$0xf]
    %v302 = vld [vmem:[%s1 + $0xc] sm:$0xf]
    %v303 = vld [vmem:[%s1 + $0x10] sm:$0xf]
    %v304 = vld [vmem:[%s1 + $0x14] sm:$0xf]
    %v305 = vpack.c.bf16 %v300, %v299
    %v310 = vunpack.c.l.b16 %v301
    %v311 = vunpack.c.l.b16 %v302
    %v312 = vunpack.c.l.b16 %v303
    %v313 = vunpack.c.l.b16 %v304
    %v314 = vpack.c.b16 %v311, %v310
    %v315 = vpack.c.b16 %v313, %v312
    %vm318 = vcmask 261120
    %v320 = vsel %vm318, %v305, 0
    %322 = vmatprep.subr.bf16.mxu0 0
    %323 = vmatpush1.bf16.msra.mxu0 %v314
    %324 = vmatprep.subr.bf16.mxu0 0
    %325 = vmatpush1.bf16.msra.mxu0 %v315
    %326 = vmatprep.subr.bf16.mxu0 0
    %327 = vmatpush1.bf16.msra.mxu0 0
    %328 = vmatprep.subr.bf16.mxu0 0
    %329 = vmatpush1.bf16.msra.mxu0 0
    %330 = vmatprep.subr.bf16.mxu0 0
    %331 = vmatpush1.bf16.msra.mxu0 0
    %332 = vmatprep.subr.bf16.mxu0 0
    %333 = vmatpush1.bf16.msra.mxu0 0
    %334 = vmatprep.subr.bf16.mxu0 0
    %335 = vmatpush1.bf16.msra.mxu0 0
    %336 = vmatprep.subr.bf16.mxu0 0
    %337 = vmatpush1.bf16.msra.mxu0 0
    %338 = vmatprep.subr.bf16.mxu0 0
    %339 = vmatpush1.bf16.msra.mxu0 0
    %340 = vmatprep.subr.bf16.mxu0 0
    %341 = vmatpush1.bf16.msra.mxu0 0
    %342 = vmatprep.subr.bf16.mxu0 0
    %343 = vmatpush1.bf16.msra.mxu0 0
    %344 = vmatprep.subr.bf16.mxu0 0
    %345 = vmatpush1.bf16.msra.mxu0 0
    %346 = vmatprep.subr.bf16.mxu0 0
    %347 = vmatpush1.bf16.msra.mxu0 0
    %348 = vmatprep.subr.bf16.mxu0 0
    %349 = vmatpush1.bf16.msra.mxu0 0
    %350 = vmatprep.subr.bf16.mxu0 0
    %351 = vmatpush1.bf16.msra.mxu0 0
    %352 = vmatprep.subr.bf16.mxu0 0
    %353 = vmatpush1.bf16.msra.mxu0 0
    %354 = vmatprep.mubr.bf16.mxu0 0
    %355 = vmatmul.mubr.bf16.gmra.mrb[0].mxu0 %v320
    %v356 = vpop.f32.mrb[0].mxu0
    %v357 = vadd.f32 0.0, %v356
    %v358 = vpop.f32.mrb[0].mxu0
    %v359 = vpop.f32.mrb[0].mxu0
    %v360 = vadd.f32 0.0, %v359
    %v361 = vpop.f32.mrb[0].mxu0
    %362 = vdwg.mxu0
    %365 = vrot.lane.b32.xlu0 %v357, 120
    %v366 = vpop.permute.xlu0 %365
    %367 = vrot.lane.b32.xlu0 %v360, 120
    %v368 = vpop.permute.xlu0 %367
    %371 = vxpose.xlu0.b32.start [1/16] %v366, 128
    %372 = vxpose.xlu0.b32.cont [2/16] %v368, 128
    %373 = vxpose.xlu0.b32.cont [3/16] 0.0, 128
    %374 = vxpose.xlu0.b32.cont [4/16] 0.0, 128
    %375 = vxpose.xlu0.b32.cont [5/16] 0.0, 128
    %376 = vxpose.xlu0.b32.cont [6/16] 0.0, 128
    %377 = vxpose.xlu0.b32.cont [7/16] 0.0, 128
    %378 = vxpose.xlu0.b32.cont [8/16] 0.0, 128
    %379 = vxpose.xlu0.b32.cont [9/16] 0.0, 128
    %380 = vxpose.xlu0.b32.cont [10/16] 0.0, 128
    %381 = vxpose.xlu0.b32.cont [11/16] 0.0, 128
    %382 = vxpose.xlu0.b32.cont [12/16] 0.0, 128
    %383 = vxpose.xlu0.b32.cont [13/16] 0.0, 128
    %384 = vxpose.xlu0.b32.cont [14/16] 0.0, 128
    %385 = vxpose.xlu0.b32.cont [15/16] 0.0, 128
    %386 = vxpose.xlu0.b32.end [16/16] 0.0, 128
    %v387 = vpop.trf.xlu0
    %v388 = vpop.trf.xlu0
    %v389 = vpop.trf.xlu0
    %v390 = vpop.trf.xlu0
    %v391 = vpop.trf.xlu0
    %v392 = vpop.trf.xlu0
    %v393 = vpop.trf.xlu0
    %v394 = vpop.trf.xlu0
    %v395 = vpop.trf.xlu0
    %v396 = vpop.trf.xlu0
    %v397 = vpop.trf.xlu0
    %v398 = vpop.trf.xlu0
    %v399 = vpop.trf.xlu0
    %v400 = vpop.trf.xlu0
    %v401 = vpop.trf.xlu0
    %v402 = vpop.trf.xlu0
    %403 = vset.pattern.permute.xlu0 9
    %404 = vperm.xlu0 %403, %v357
    %v405 = vpop.permute.xlu0 %404
    %407 = vset.pattern.permute.xlu0 9
    %408 = vperm.xlu0 %407, %v360
    %v409 = vpop.permute.xlu0 %408
    %v411 = vlaneseq
    %v412 = vshrl.u32 %v411, 7
    %v413 = vsub.s32 0, %v412
    %v414 = vrot.slane %v387, %v413
    %v415 = vadd.f32 %v405, %v414
    %v416 = vadd.f32 %v409, %v414
    %vm417 = vcmp.gt.f32.partialorder %v415, 0.0
    %vm418 = vcmp.gt.f32.partialorder %v416, 0.0
    %v419 = vmul.f32 %v415, 0.2
    %v420 = vmul.f32 %v416, 0.2
    %v421 = vsel %vm417, %v415, %v419
    %v422 = vsel %vm418, %v416, %v420
    %v423 = vadd.f32 %v421, %v34
    %v424 = vadd.f32 %v422, %v35
    %v425 = vsel %vm84, %v423, -inf
    %426 = vmax.xlane.f32.xlu0 %v425
    %v427 = vpop.xlane.xlu0 %426
    %v428 = vsel %vm84, %v424, -inf
    %429 = vmax.xlane.f32.xlu0 %v428
    %v430 = vpop.xlane.xlu0 %429
    %v431 = vsub.f32 %v423, %v427
    %v432 = vsub.f32 %v424, %v430
    %v433 = vmul.f32 %v431, 1.442695
    %v434 = vpow.pop %v433
    %v435 = vmul.f32 %v432, 1.442695
    %v436 = vpow.pop %v435
    %v437 = vsel %vm84, %v434, 0.0
    %438 = vadd.xlane.f32.xlu0 %v437
    %v439 = vpop.xlane.xlu0 %438
    %v440 = vsel %vm84, %v436, 0.0
    %441 = vadd.xlane.f32.xlu0 %v440
    %v442 = vpop.xlane.xlu0 %441
    %v443 = vrcp.pop %v439
    %v444 = vrcp.pop %v442
    %v445 = vmul.f32 %v434, %v443
    %v446 = vmul.f32 %v436, %v444
    %v447 = vpack.c.bf16 %v446, %v445
    %v448 = vpack.c.bf16 %v360, %v357
    %v449 = vld [vmem:[#allocation2 + $0x8] sm:$0x1]
    %v450 = vlaneseq
    %v451 = vshrl.u32 %v450, 7
    %v452 = vsub.s32 0, %v451
    %v453 = vrot.slane %v449, %v452
    %v455 = vsel %vm84, %v447, 0
    %457 = vmatprep.subr.bf16.mxu0 0
    %458 = vmatpush1.bf16.msra.mxu0 %v448
    %459 = vmatprep.subr.bf16.mxu0 0
    %460 = vmatpush1.bf16.msra.mxu0 0
    %461 = vmatprep.subr.bf16.mxu0 0
    %462 = vmatpush1.bf16.msra.mxu0 0
    %463 = vmatprep.subr.bf16.mxu0 0
    %464 = vmatpush1.bf16.msra.mxu0 0
    %465 = vmatprep.subr.bf16.mxu0 0
    %466 = vmatpush1.bf16.msra.mxu0 0
    %467 = vmatprep.subr.bf16.mxu0 0
    %468 = vmatpush1.bf16.msra.mxu0 0
    %469 = vmatprep.subr.bf16.mxu0 0
    %470 = vmatpush1.bf16.msra.mxu0 0
    %471 = vmatprep.subr.bf16.mxu0 0
    %472 = vmatpush1.bf16.msra.mxu0 0
    %473 = vmatprep.subr.bf16.mxu0 0
    %474 = vmatpush1.bf16.msra.mxu0 0
    %475 = vmatprep.subr.bf16.mxu0 0
    %476 = vmatpush1.bf16.msra.mxu0 0
    %477 = vmatprep.subr.bf16.mxu0 0
    %478 = vmatpush1.bf16.msra.mxu0 0
    %479 = vmatprep.subr.bf16.mxu0 0
    %480 = vmatpush1.bf16.msra.mxu0 0
    %481 = vmatprep.subr.bf16.mxu0 0
    %482 = vmatpush1.bf16.msra.mxu0 0
    %483 = vmatprep.subr.bf16.mxu0 0
    %484 = vmatpush1.bf16.msra.mxu0 0
    %485 = vmatprep.subr.bf16.mxu0 0
    %486 = vmatpush1.bf16.msra.mxu0 0
    %487 = vmatprep.subr.bf16.mxu0 0
    %488 = vmatpush1.bf16.msra.mxu0 0
    %489 = vmatprep.mubr.bf16.mxu0 0
    %490 = vmatmul.mubr.bf16.gmra.mrb[0].mxu0 %v455
    %v491 = vpop.f32.mrb[0].mxu0
    %v492 = vadd.f32 %v453, %v491
    %v493 = vpop.f32.mrb[0].mxu0
    %v494 = vpop.f32.mrb[0].mxu0
    %v495 = vadd.f32 %v453, %v494
    %v496 = vpop.f32.mrb[0].mxu0
    %497 = vdwg.mxu0
    %vm498 = vcmask 64512
    %499 = vst.msk [vmem:[%s4] sm:$0xff] %vm498, %v492
    %500 = vst.msk [vmem:[%s4 + $0x8] sm:$0xff] %vm498, %v495
    %v501 = vld [vmem:[%s1 + $0x18] sm:$0x7]
    %v502 = vld [vmem:[%s1 + $0x20] sm:$0xf]
    %v503 = vld [vmem:[%s1 + $0x24] sm:$0xf]
    %v504 = vld [vmem:[%s1 + $0x28] sm:$0xf]
    %v505 = vld [vmem:[%s1 + $0x2c] sm:$0xf]
    %v506 = vld [vmem:[%s3] sm:$0xff]
    %v507 = vld [vmem:[%s3 + $0x8] sm:$0xff]
    %v508 = vld [vmem:[%s3 + $0x10] sm:$0xff]
    %v509 = vpack.c.bf16 %v507, %v506
    %v510 = vpack.c.bf16 %v508, %v508
    %v511 = vld [vmem:[#allocation2 + $0x10] sm:$0x1]
    %v512 = vlaneseq
    %v513 = vshrl.u32 %v512, 7
    %v514 = vsub.s32 0, %v513
    %v515 = vrot.slane %v511, %v514
    %vm516 = vcmask 48128
    %v518 = vsel %vm516, %v509, 0
    %v521 = vsel %vm516, %v510, 0
    %vm523 = vcmask 1042432
    %v525 = vsel %vm523, %v501, 0
    %527 = vmatprep.subr.bf16.mxu0 0
    %528 = vmatpush1.bf16.msra.mxu0 %v525
    %529 = vmatprep.subr.bf16.mxu0 0
    %530 = vmatpush1.bf16.msra.mxu0 0
    %531 = vmatprep.subr.bf16.mxu0 0
    %532 = vmatpush1.bf16.msra.mxu0 0
    %533 = vmatprep.subr.bf16.mxu0 0
    %534 = vmatpush1.bf16.msra.mxu0 0
    %535 = vmatprep.subr.bf16.mxu0 0
    %536 = vmatpush1.bf16.msra.mxu0 0
    %537 = vmatprep.subr.bf16.mxu0 0
    %538 = vmatpush1.bf16.msra.mxu0 0
    %539 = vmatprep.subr.bf16.mxu0 0
    %540 = vmatpush1.bf16.msra.mxu0 0
    %541 = vmatprep.subr.bf16.mxu0 0
    %542 = vmatpush1.bf16.msra.mxu0 0
    %543 = vmatprep.subr.bf16.mxu0 0
    %544 = vmatpush1.bf16.msra.mxu0 0
    %545 = vmatprep.subr.bf16.mxu0 0
    %546 = vmatpush1.bf16.msra.mxu0 0
    %547 = vmatprep.subr.bf16.mxu0 0
    %548 = vmatpush1.bf16.msra.mxu0 0
    %549 = vmatprep.subr.bf16.mxu0 0
    %550 = vmatpush1.bf16.msra.mxu0 0
    %551 = vmatprep.subr.bf16.mxu0 0
    %552 = vmatpush1.bf16.msra.mxu0 0
    %553 = vmatprep.subr.bf16.mxu0 0
    %554 = vmatpush1.bf16.msra.mxu0 0
    %555 = vmatprep.subr.bf16.mxu0 0
    %556 = vmatpush1.bf16.msra.mxu0 0
    %557 = vmatprep.subr.bf16.mxu0 0
    %558 = vmatpush1.bf16.msra.mxu0 0
    %559 = vmatprep.mubr.bf16.mxu0 0
    %560 = vmatmul.mubr.bf16.gmra.mrb[0].mxu0 %v518
    %v561 = vpop.f32.mrb[0].mxu0
    %v562 = vadd.f32 %v515, %v561
    %v563 = vpop.f32.mrb[0].mxu0
    %v564 = vpop.f32.mrb[0].mxu0
    %v565 = vadd.f32 %v515, %v564
    %v566 = vpop.f32.mrb[0].mxu0
    %567 = vmatprep.mubr.bf16.mxu0 0
    %568 = vmatmul.mubr.bf16.gmra.mrb[0].mxu0 %v521
    %v569 = vpop.f32.mrb[0].mxu0
    %v570 = vadd.f32 %v515, %v569
    %v571 = vpop.f32.mrb[0].mxu0
    %v572 = vpop.f32.mrb[0].mxu0
    %v573 = vpop.f32.mrb[0].mxu0
    %574 = vdwg.mxu0
    %v575 = vmax.f32 %v562, 0.0
    %v576 = vmax.f32 %v565, 0.0
    %v577 = vmax.f32 %v570, 0.0
    %v578 = vpack.c.bf16 %v576, %v575
    %v579 = vpack.c.bf16 %v577, %v577
    %v580 = vld [vmem:[#allocation2 + $0x18] sm:$0x1]
    %v581 = vlaneseq
    %v582 = vshrl.u32 %v581, 7
    %v583 = vsub.s32 0, %v582
    %v584 = vrot.slane %v580, %v583
    %v589 = vunpack.c.l.b16 %v502
    %v590 = vunpack.c.l.b16 %v503
    %v591 = vunpack.c.l.b16 %v504
    %v592 = vunpack.c.l.b16 %v505
    %v593 = vpack.c.b16 %v590, %v589
    %v594 = vpack.c.b16 %v592, %v591
    %v598 = vsel %vm318, %v578, 0
    %v601 = vsel %vm318, %v579, 0
    %603 = vmatprep.subr.bf16.mxu0 0
    %604 = vmatpush1.bf16.msra.mxu0 %v593
    %605 = vmatprep.subr.bf16.mxu0 0
    %606 = vmatpush1.bf16.msra.mxu0 %v594
    %607 = vmatprep.subr.bf16.mxu0 0
    %608 = vmatpush1.bf16.msra.mxu0 0
    %609 = vmatprep.subr.bf16.mxu0 0
    %610 = vmatpush1.bf16.msra.mxu0 0
    %611 = vmatprep.subr.bf16.mxu0 0
    %612 = vmatpush1.bf16.msra.mxu0 0
    %613 = vmatprep.subr.bf16.mxu0 0
    %614 = vmatpush1.bf16.msra.mxu0 0
    %615 = vmatprep.subr.bf16.mxu0 0
    %616 = vmatpush1.bf16.msra.mxu0 0
    %617 = vmatprep.subr.bf16.mxu0 0
    %618 = vmatpush1.bf16.msra.mxu0 0
    %619 = vmatprep.subr.bf16.mxu0 0
    %620 = vmatpush1.bf16.msra.mxu0 0
    %621 = vmatprep.subr.bf16.mxu0 0
    %622 = vmatpush1.bf16.msra.mxu0 0
    %623 = vmatprep.subr.bf16.mxu0 0
    %624 = vmatpush1.bf16.msra.mxu0 0
    %625 = vmatprep.subr.bf16.mxu0 0
    %626 = vmatpush1.bf16.msra.mxu0 0
    %627 = vmatprep.subr.bf16.mxu0 0
    %628 = vmatpush1.bf16.msra.mxu0 0
    %629 = vmatprep.subr.bf16.mxu0 0
    %630 = vmatpush1.bf16.msra.mxu0 0
    %631 = vmatprep.subr.bf16.mxu0 0
    %632 = vmatpush1.bf16.msra.mxu0 0
    %633 = vmatprep.subr.bf16.mxu0 0
    %634 = vmatpush1.bf16.msra.mxu0 0
    %635 = vmatprep.mubr.bf16.mxu0 0
    %636 = vmatmul.mubr.bf16.gmra.mrb[0].mxu0 %v598
    %v637 = vpop.f32.mrb[0].mxu0
    %v638 = vadd.f32 %v584, %v637
    %v639 = vpop.f32.mrb[0].mxu0
    %v640 = vpop.f32.mrb[0].mxu0
    %v641 = vadd.f32 %v584, %v640
    %v642 = vpop.f32.mrb[0].mxu0
    %643 = vmatprep.mubr.bf16.mxu0 0
    %644 = vmatmul.mubr.bf16.gmra.mrb[0].mxu0 %v601
    %v645 = vpop.f32.mrb[0].mxu0
    %v646 = vadd.f32 %v584, %v645
    %v647 = vpop.f32.mrb[0].mxu0
    %v648 = vpop.f32.mrb[0].mxu0
    %v649 = vpop.f32.mrb[0].mxu0
    %650 = vdwg.mxu0
    %651 = vst.msk [vmem:[%s5] sm:$0xff] %vm498, %v638
    %652 = vst.msk [vmem:[%s5 + $0x8] sm:$0xff] %vm498, %v641
    %653 = vst.msk [vmem:[%s5 + $0x10] sm:$0xff] %vm498, %v646
    // Predicated region
    $region22: #{tpu_custom_call.1} parent=1 // pred_check
      _
    $region23: #{tpu_custom_call.1} parent=1 // pred_check_branch
      %655 = sbr.rel (0) target = $region25
    $region24: #{tpu_custom_call.1} parent=1 // pred_region
      _
    $region25: #{tpu_custom_call.1} parent=1 // pred_fallthru
      _
    // Predicated region
    $region26: #{tpu_custom_call.1} parent=1 // pred_check
      _
    $region27: #{tpu_custom_call.1} parent=1 // pred_check_branch
      %657 = sbr.rel (0) target = $region29
    $region28: #{tpu_custom_call.1} parent=1 // pred_region
      _
    $region29: #{tpu_custom_call.1} parent=1 // pred_fallthru
      _
    // Predicated region
    $region30: #{tpu_custom_call.1} parent=1 // pred_check
      _
    $region31: #{tpu_custom_call.1} parent=1 // pred_check_branch
      %659 = sbr.rel (0) target = $region33
    $region32: #{tpu_custom_call.1} parent=1 // pred_region
      _
    $region33: #{tpu_custom_call.1} parent=1 // pred_fallthru
      _
    // Predicated region
    $region34: #{tpu_custom_call.1} parent=1 // pred_check
      _
    $region35: #{tpu_custom_call.1} parent=1 // pred_check_branch
      %661 = sbr.rel (0) target = $region37
    $region36: #{tpu_custom_call.1} parent=1 // pred_region
      _
    $region37: #{tpu_custom_call.1} parent=1 // pred_fallthru
      _
    %662 = vsyncpa [#allocation3], 1

</llo_original>
